<compile_context>
chip_gen: v7x
topology: tpu7x:2x2x1
jax: 0.10.0
libtpu: 0.0.40
codegen_flags: <defaults>
</compile_context>

<pallas_src>
import functools

import jax
import jax.numpy as jnp
from jax.experimental import pallas as pl
from jax.experimental.pallas import tpu as pltpu

BN_EPS = 1e-5


# ---------------------------------------------------------------------------
# Kernel
# ---------------------------------------------------------------------------
def a2c_kernel(x_ref, w1_ref, w2_ref, wh_ref, wout_ref, slab_ref, bout_ref,
               out_ref):
    """Fused A2C forward (gridless: every operand resident in VMEM).

    slab_ref rows: [b1, g1, be1, b2, g2, be2, bh, gh, beh]    (each (1, 256))
    wh   = [wah | wch]                     (256, 256)  fused head hidden.
    wout = block-diag(wao, wco), 0-padded  (256, 128)  fused lane-dense output.
    """
    slab = slab_ref[...]                               # (9, 256) f32

    def linear_relu_bn(h, w_ref, row):
        # Linear (f32 MXU, f32 accumulation) + bias + ReLU.
        z = jnp.dot(h, w_ref[...], preferred_element_type=jnp.float32)
        z = jnp.maximum(z + slab[row:row + 1, :], 0.0)
        # BatchNorm1d, training mode, biased variance.
        # var = E[z^2] - mean^2: the two reductions are independent (XLU can
        # pipeline them); clamp guards f32 cancellation.
        mean = jnp.mean(z, axis=0, keepdims=True)
        msq = jnp.mean(z * z, axis=0, keepdims=True)
        var = jnp.maximum(msq - mean * mean, 0.0)
        scale = slab[row + 1:row + 2, :] * jax.lax.rsqrt(var + BN_EPS)
        return (z - mean) * scale + slab[row + 2:row + 3, :]

    h = linear_relu_bn(x_ref[...], w1_ref, 0)          # shared layer 1
    h = linear_relu_bn(h, w2_ref, 3)                   # shared layer 2
    h = linear_relu_bn(h, wh_ref, 6)                   # fused actor|critic hidden

    # Fused output projection: [actor_logits | critic_value | zero pad].
    out_ref[...] = (
        jnp.dot(h, wout_ref[...], preferred_element_type=jnp.float32)
        + bout_ref[...]
    )


# ---------------------------------------------------------------------------
# Parameter construction / packing
# ---------------------------------------------------------------------------
def init_params(key, state_dim, action_dim, hidden_dims=(256, 256, 128)):
    """PyTorch-equivalent init: Kaiming-normal (fan_in, relu) weights, zero
    biases, BN gamma=1 / beta=0.  Weights stored as (in, out)."""
    h0, h1, h2 = hidden_dims
    dims = [
        ("w1", state_dim, h0), ("w2", h0, h1),
        ("wah", h1, h2), ("wao", h2, action_dim),
        ("wch", h1, h2), ("wco", h2, 1),
    ]
    keys = jax.random.split(key, len(dims))
    p = {}
    for k, (name, fan_in, fan_out) in zip(keys, dims):
        std = (2.0 / fan_in) ** 0.5
        p[name] = std * jax.random.normal(k, (fan_in, fan_out), dtype=jnp.float32)
        p["b" + name[1:]] = jnp.zeros((1, fan_out), jnp.float32)
    for name, d in (("1", h0), ("2", h1), ("ah", h2), ("ch", h2)):
        p["g" + name] = jnp.ones((1, d), jnp.float32)
        p["be" + name] = jnp.zeros((1, d), jnp.float32)
    return p


def pack_params(p, action_dim):
    """Fuse heads + output projections and pack small vectors into one slab.
    (Assumes hidden_dims = (256, 256, 128) so all slab rows are 256 wide.)"""
    h2 = p["wao"].shape[0]                              # 128
    out_dim = action_dim + 1
    out_pad = max(128, -(-out_dim // 128) * 128)        # lane-dense output width

    # Fused actor|critic hidden layer and its bias / BN rows.
    wh = jnp.concatenate([p["wah"], p["wch"]], axis=1)                  # (256, 256)
    slab = jnp.concatenate(
        [p["b1"], p["g1"], p["be1"],
         p["b2"], p["g2"], p["be2"],
         jnp.concatenate([p["bah"], p["bch"]], axis=1),
         jnp.concatenate([p["gah"], p["gch"]], axis=1),
         jnp.concatenate([p["beah"], p["bech"]], axis=1)],
        axis=0)                                                         # (9, 256)

    # Block-diagonal [wao 0; 0 wco], zero-padded to a 128-lane multiple so the
    # output store is unmasked / lane-dense.  Padding with exact zeros keeps
    # the fused matmul bit-identical to the separate projections.
    wout = jnp.zeros((2 * h2, out_pad), jnp.float32)
    wout = wout.at[:h2, :action_dim].set(p["wao"])
    wout = wout.at[h2:, action_dim:out_dim].set(p["wco"])
    bout = jnp.zeros((1, out_pad), jnp.float32)
    bout = bout.at[:, :action_dim].set(p["bao"])
    bout = bout.at[:, action_dim:out_dim].set(p["bco"])

    return {"w1": p["w1"], "w2": p["w2"], "wh": wh, "wout": wout,
            "slab": slab, "bout": bout}


# ---------------------------------------------------------------------------
# Wrapper
# ---------------------------------------------------------------------------
@functools.partial(jax.jit, static_argnames=("action_dim",))
def a2c_forward(x, packed, action_dim):
    if x.ndim == 1:                      # mirror torch `x.unsqueeze(0)`
        x = x[None, :]
    B, S = x.shape
    out_pad = packed["bout"].shape[-1]

    # Footprint-sized scoped-VMEM limit: f32 weights + per-row live activation
    # working set (+ headroom), clamped to [32 MiB, 64 MiB] so it is safe on
    # every generation (v7x physical VMEM is 64 MiB per TensorCore).
    weight_bytes = sum(int(packed[k].size) * 4
                       for k in ("w1", "w2", "wh", "wout", "slab", "bout"))
    footprint = weight_bytes + B * 8192 + (2 << 20)
    vmem_limit = int(min(64 << 20, max(32 << 20, footprint)))

    h0 = packed["w1"].shape[1]           # 256
    h1 = packed["w2"].shape[1]           # 256
    hf = packed["wh"].shape[1]           # 256 (fused 2*128)
    flops = 2 * B * (S * h0 + h0 * h1 + h1 * hf + hf * out_pad)
    bytes_accessed = (weight_bytes + int(x.size) * 4 + B * out_pad * 4)

    vmem = pl.BlockSpec(memory_space=pltpu.MemorySpace.VMEM)
    out = pl.pallas_call(
        a2c_kernel,
        out_shape=jax.ShapeDtypeStruct((B, out_pad), jnp.float32),
        in_specs=[vmem] * 7,
        out_specs=vmem,
        compiler_params=pltpu.CompilerParams(vmem_limit_bytes=vmem_limit),
        cost_estimate=pl.CostEstimate(flops=flops,
                                      transcendentals=3 * hf,
                                      bytes_accessed=bytes_accessed),
    )(x, packed["w1"], packed["w2"], packed["wh"],
      packed["wout"], packed["slab"], packed["bout"])

    actor = out[:, :action_dim]
    critic = out[:, action_dim:action_dim + 1]
    return actor, critic


# ---------------------------------------------------------------------------
# Plain-JAX reference (unfused, PyTorch semantics, f32 throughout)
# ---------------------------------------------------------------------------
def _reference(x, p):
    if x.ndim == 1:
        x = x[None, :]

    def lrb(h, w, b, g, be):
        z = jnp.maximum(jnp.dot(h, w, preferred_element_type=jnp.float32) + b, 0.0)
        m = jnp.mean(z, axis=0, keepdims=True)
        v = jnp.mean((z - m) ** 2, axis=0, keepdims=True)    # biased variance
        return (z - m) / jnp.sqrt(v + BN_EPS) * g + be

    h = lrb(x, p["w1"], p["b1"], p["g1"], p["be1"])
    h = lrb(h, p["w2"], p["b2"], p["g2"], p["be2"])
    a = lrb(h, p["wah"], p["bah"], p["gah"], p["beah"])
    c = lrb(h, p["wch"], p["bch"], p["gch"], p["bech"])
    return (jnp.dot(a, p["wao"]) + p["bao"],
            jnp.dot(c, p["wco"]) + p["bco"])


if __name__ == "__main__":
    B, STATE_DIM, ACTION_DIM = 8, 32, 16
    HIDDEN_DIMS = (256, 256, 128)

    key = jax.random.PRNGKey(0)
    kx, kp = jax.random.split(key)
    x = jax.random.normal(kx, (B, STATE_DIM), dtype=jnp.float32)
    raw = init_params(kp, STATE_DIM, ACTION_DIM, HIDDEN_DIMS)
    packed = pack_params(raw, ACTION_DIM)

    actor, critic = a2c_forward(x, packed, ACTION_DIM)
    jax.block_until_ready((actor, critic))
    assert actor.shape == (B, ACTION_DIM) and critic.shape == (B, 1)

    # f32 PyTorch-semantics reference: the fused kernel should match tightly
    # (head/output fusion is exact; only the BN variance formula differs).
    ref_a, ref_c = _reference(x, raw)
    assert jnp.allclose(actor, ref_a, atol=1e-3, rtol=1e-3), (
        float(jnp.max(jnp.abs(actor - ref_a))))
    assert jnp.allclose(critic, ref_c, atol=1e-3, rtol=1e-3), (
        float(jnp.max(jnp.abs(critic - ref_c))))

    print("KERNEL_OK")
</pallas_src>

<mosaic_0001>
module attributes {stable_mosaic.version = 11 : i64} {
  func.func @a2c_kernel(%arg0: memref<8x32xf32, #tpu.memory_space<vmem>>, %arg1: memref<32x256xf32, #tpu.memory_space<vmem>>, %arg2: memref<256x256xf32, #tpu.memory_space<vmem>>, %arg3: memref<256x256xf32, #tpu.memory_space<vmem>>, %arg4: memref<256x128xf32, #tpu.memory_space<vmem>>, %arg5: memref<9x256xf32, #tpu.memory_space<vmem>>, %arg6: memref<1x128xf32, #tpu.memory_space<vmem>>, %arg7: memref<8x128xf32, #tpu.memory_space<vmem>>) attributes {dimension_semantics = [], scalar_prefetch = 0 : i64, scratch_operands = 0 : i64, tpu.core_type = #tpu.core_type<tc>} {
    %c0 = arith.constant 0 : index
    %c0_0 = arith.constant 0 : index
    %0 = vector.load %arg5[%c0, %c0_0] : memref<9x256xf32, #tpu.memory_space<vmem>>, vector<9x256xf32>
    %c0_1 = arith.constant 0 : index
    %c0_2 = arith.constant 0 : index
    %1 = vector.load %arg0[%c0_1, %c0_2] : memref<8x32xf32, #tpu.memory_space<vmem>>, vector<8x32xf32>
    %c0_3 = arith.constant 0 : index
    %c0_4 = arith.constant 0 : index
    %2 = vector.load %arg1[%c0_3, %c0_4] : memref<32x256xf32, #tpu.memory_space<vmem>>, vector<32x256xf32>
    %cst = arith.constant dense<0.000000e+00> : vector<8x256xf32>
    %3 = tpu.matmul %1, %2, %cst {dimension_numbers = #tpu.dot_dimension_numbers<[1], [0], [0], [1], [0, 0, 1, 1], [], []>} : vector<8x32xf32>, vector<32x256xf32>, vector<8x256xf32> -> vector<8x256xf32>
    %4 = vector.extract_strided_slice %0 {offsets = [0, 0], sizes = [1, 256], strides = [1, 1]} : vector<9x256xf32> to vector<1x256xf32>
    %5 = vector.broadcast %4 : vector<1x256xf32> to vector<8x256xf32>
    %6 = arith.addf %3, %5 : vector<8x256xf32>
    %cst_5 = arith.constant 0.000000e+00 : f32
    %7 = vector.broadcast %cst_5 : f32 to vector<8x256xf32>
    %8 = arith.maximumf %6, %7 : vector<8x256xf32>
    %cst_6 = arith.constant dense<0.000000e+00> : vector<256xf32>
    %9 = vector.multi_reduction <add>, %8, %cst_6 [0] : vector<8x256xf32> to vector<256xf32>
    %10 = vector.shape_cast %9 : vector<256xf32> to vector<1x256xf32>
    %cst_7 = arith.constant 8.000000e+00 : f32
    %11 = vector.broadcast %cst_7 : f32 to vector<1x256xf32>
    %12 = arith.divf %10, %11 : vector<1x256xf32>
    %13 = arith.mulf %8, %8 : vector<8x256xf32>
    %cst_8 = arith.constant dense<0.000000e+00> : vector<256xf32>
    %14 = vector.multi_reduction <add>, %13, %cst_8 [0] : vector<8x256xf32> to vector<256xf32>
    %15 = vector.shape_cast %14 : vector<256xf32> to vector<1x256xf32>
    %cst_9 = arith.constant 8.000000e+00 : f32
    %16 = vector.broadcast %cst_9 : f32 to vector<1x256xf32>
    %17 = arith.divf %15, %16 : vector<1x256xf32>
    %18 = arith.mulf %12, %12 : vector<1x256xf32>
    %19 = arith.subf %17, %18 : vector<1x256xf32>
    %cst_10 = arith.constant 0.000000e+00 : f32
    %20 = vector.broadcast %cst_10 : f32 to vector<1x256xf32>
    %21 = arith.maximumf %19, %20 : vector<1x256xf32>
    %22 = vector.extract_strided_slice %0 {offsets = [1, 0], sizes = [1, 256], strides = [1, 1]} : vector<9x256xf32> to vector<1x256xf32>
    %cst_11 = arith.constant 9.99999974E-6 : f32
    %23 = vector.broadcast %cst_11 : f32 to vector<1x256xf32>
    %24 = arith.addf %21, %23 : vector<1x256xf32>
    %25 = math.rsqrt %24 : vector<1x256xf32>
    %26 = arith.mulf %22, %25 : vector<1x256xf32>
    %27 = vector.broadcast %12 : vector<1x256xf32> to vector<8x256xf32>
    %28 = arith.subf %8, %27 : vector<8x256xf32>
    %29 = vector.broadcast %26 : vector<1x256xf32> to vector<8x256xf32>
    %30 = arith.mulf %28, %29 : vector<8x256xf32>
    %31 = vector.extract_strided_slice %0 {offsets = [2, 0], sizes = [1, 256], strides = [1, 1]} : vector<9x256xf32> to vector<1x256xf32>
    %32 = vector.broadcast %31 : vector<1x256xf32> to vector<8x256xf32>
    %33 = arith.addf %30, %32 : vector<8x256xf32>
    %c0_12 = arith.constant 0 : index
    %c0_13 = arith.constant 0 : index
    %34 = vector.load %arg2[%c0_12, %c0_13] : memref<256x256xf32, #tpu.memory_space<vmem>>, vector<256x256xf32>
    %cst_14 = arith.constant dense<0.000000e+00> : vector<8x256xf32>
    %35 = tpu.matmul %33, %34, %cst_14 {dimension_numbers = #tpu.dot_dimension_numbers<[1], [0], [0], [1], [0, 0, 1, 1], [], []>} : vector<8x256xf32>, vector<256x256xf32>, vector<8x256xf32> -> vector<8x256xf32>
    %36 = vector.extract_strided_slice %0 {offsets = [3, 0], sizes = [1, 256], strides = [1, 1]} : vector<9x256xf32> to vector<1x256xf32>
    %37 = vector.broadcast %36 : vector<1x256xf32> to vector<8x256xf32>
    %38 = arith.addf %35, %37 : vector<8x256xf32>
    %cst_15 = arith.constant 0.000000e+00 : f32
    %39 = vector.broadcast %cst_15 : f32 to vector<8x256xf32>
    %40 = arith.maximumf %38, %39 : vector<8x256xf32>
    %cst_16 = arith.constant dense<0.000000e+00> : vector<256xf32>
    %41 = vector.multi_reduction <add>, %40, %cst_16 [0] : vector<8x256xf32> to vector<256xf32>
    %42 = vector.shape_cast %41 : vector<256xf32> to vector<1x256xf32>
    %cst_17 = arith.constant 8.000000e+00 : f32
    %43 = vector.broadcast %cst_17 : f32 to vector<1x256xf32>
    %44 = arith.divf %42, %43 : vector<1x256xf32>
    %45 = arith.mulf %40, %40 : vector<8x256xf32>
    %cst_18 = arith.constant dense<0.000000e+00> : vector<256xf32>
    %46 = vector.multi_reduction <add>, %45, %cst_18 [0] : vector<8x256xf32> to vector<256xf32>
    %47 = vector.shape_cast %46 : vector<256xf32> to vector<1x256xf32>
    %cst_19 = arith.constant 8.000000e+00 : f32
    %48 = vector.broadcast %cst_19 : f32 to vector<1x256xf32>
    %49 = arith.divf %47, %48 : vector<1x256xf32>
    %50 = arith.mulf %44, %44 : vector<1x256xf32>
    %51 = arith.subf %49, %50 : vector<1x256xf32>
    %cst_20 = arith.constant 0.000000e+00 : f32
    %52 = vector.broadcast %cst_20 : f32 to vector<1x256xf32>
    %53 = arith.maximumf %51, %52 : vector<1x256xf32>
    %54 = vector.extract_strided_slice %0 {offsets = [4, 0], sizes = [1, 256], strides = [1, 1]} : vector<9x256xf32> to vector<1x256xf32>
    %cst_21 = arith.constant 9.99999974E-6 : f32
    %55 = vector.broadcast %cst_21 : f32 to vector<1x256xf32>
    %56 = arith.addf %53, %55 : vector<1x256xf32>
    %57 = math.rsqrt %56 : vector<1x256xf32>
    %58 = arith.mulf %54, %57 : vector<1x256xf32>
    %59 = vector.broadcast %44 : vector<1x256xf32> to vector<8x256xf32>
    %60 = arith.subf %40, %59 : vector<8x256xf32>
    %61 = vector.broadcast %58 : vector<1x256xf32> to vector<8x256xf32>
    %62 = arith.mulf %60, %61 : vector<8x256xf32>
    %63 = vector.extract_strided_slice %0 {offsets = [5, 0], sizes = [1, 256], strides = [1, 1]} : vector<9x256xf32> to vector<1x256xf32>
    %64 = vector.broadcast %63 : vector<1x256xf32> to vector<8x256xf32>
    %65 = arith.addf %62, %64 : vector<8x256xf32>
    %c0_22 = arith.constant 0 : index
    %c0_23 = arith.constant 0 : index
    %66 = vector.load %arg3[%c0_22, %c0_23] : memref<256x256xf32, #tpu.memory_space<vmem>>, vector<256x256xf32>
    %cst_24 = arith.constant dense<0.000000e+00> : vector<8x256xf32>
    %67 = tpu.matmul %65, %66, %cst_24 {dimension_numbers = #tpu.dot_dimension_numbers<[1], [0], [0], [1], [0, 0, 1, 1], [], []>} : vector<8x256xf32>, vector<256x256xf32>, vector<8x256xf32> -> vector<8x256xf32>
    %68 = vector.extract_strided_slice %0 {offsets = [6, 0], sizes = [1, 256], strides = [1, 1]} : vector<9x256xf32> to vector<1x256xf32>
    %69 = vector.broadcast %68 : vector<1x256xf32> to vector<8x256xf32>
    %70 = arith.addf %67, %69 : vector<8x256xf32>
    %cst_25 = arith.constant 0.000000e+00 : f32
    %71 = vector.broadcast %cst_25 : f32 to vector<8x256xf32>
    %72 = arith.maximumf %70, %71 : vector<8x256xf32>
    %cst_26 = arith.constant dense<0.000000e+00> : vector<256xf32>
    %73 = vector.multi_reduction <add>, %72, %cst_26 [0] : vector<8x256xf32> to vector<256xf32>
    %74 = vector.shape_cast %73 : vector<256xf32> to vector<1x256xf32>
    %cst_27 = arith.constant 8.000000e+00 : f32
    %75 = vector.broadcast %cst_27 : f32 to vector<1x256xf32>
    %76 = arith.divf %74, %75 : vector<1x256xf32>
    %77 = arith.mulf %72, %72 : vector<8x256xf32>
    %cst_28 = arith.constant dense<0.000000e+00> : vector<256xf32>
    %78 = vector.multi_reduction <add>, %77, %cst_28 [0] : vector<8x256xf32> to vector<256xf32>
    %79 = vector.shape_cast %78 : vector<256xf32> to vector<1x256xf32>
    %cst_29 = arith.constant 8.000000e+00 : f32
    %80 = vector.broadcast %cst_29 : f32 to vector<1x256xf32>
    %81 = arith.divf %79, %80 : vector<1x256xf32>
    %82 = arith.mulf %76, %76 : vector<1x256xf32>
    %83 = arith.subf %81, %82 : vector<1x256xf32>
    %cst_30 = arith.constant 0.000000e+00 : f32
    %84 = vector.broadcast %cst_30 : f32 to vector<1x256xf32>
    %85 = arith.maximumf %83, %84 : vector<1x256xf32>
    %86 = vector.extract_strided_slice %0 {offsets = [7, 0], sizes = [1, 256], strides = [1, 1]} : vector<9x256xf32> to vector<1x256xf32>
    %cst_31 = arith.constant 9.99999974E-6 : f32
    %87 = vector.broadcast %cst_31 : f32 to vector<1x256xf32>
    %88 = arith.addf %85, %87 : vector<1x256xf32>
    %89 = math.rsqrt %88 : vector<1x256xf32>
    %90 = arith.mulf %86, %89 : vector<1x256xf32>
    %91 = vector.broadcast %76 : vector<1x256xf32> to vector<8x256xf32>
    %92 = arith.subf %72, %91 : vector<8x256xf32>
    %93 = vector.broadcast %90 : vector<1x256xf32> to vector<8x256xf32>
    %94 = arith.mulf %92, %93 : vector<8x256xf32>
    %95 = vector.extract_strided_slice %0 {offsets = [8, 0], sizes = [1, 256], strides = [1, 1]} : vector<9x256xf32> to vector<1x256xf32>
    %96 = vector.broadcast %95 : vector<1x256xf32> to vector<8x256xf32>
    %97 = arith.addf %94, %96 : vector<8x256xf32>
    %c0_32 = arith.constant 0 : index
    %c0_33 = arith.constant 0 : index
    %98 = vector.load %arg4[%c0_32, %c0_33] : memref<256x128xf32, #tpu.memory_space<vmem>>, vector<256x128xf32>
    %cst_34 = arith.constant dense<0.000000e+00> : vector<8x128xf32>
    %99 = tpu.matmul %97, %98, %cst_34 {dimension_numbers = #tpu.dot_dimension_numbers<[1], [0], [0], [1], [0, 0, 1, 1], [], []>} : vector<8x256xf32>, vector<256x128xf32>, vector<8x128xf32> -> vector<8x128xf32>
    %c0_35 = arith.constant 0 : index
    %c0_36 = arith.constant 0 : index
    %100 = vector.load %arg6[%c0_35, %c0_36] : memref<1x128xf32, #tpu.memory_space<vmem>>, vector<1x128xf32>
    %101 = vector.broadcast %100 : vector<1x128xf32> to vector<8x128xf32>
    %102 = arith.addf %99, %101 : vector<8x128xf32>
    %c0_37 = arith.constant 0 : index
    %c0_38 = arith.constant 0 : index
    %103 = vector.load %arg7[%c0_37, %c0_38] : memref<8x128xf32, #tpu.memory_space<vmem>>, vector<8x128xf32>
    tpu.vector_store %arg7[%c0_37, %c0_38], %102 {strides = array<i32>} : memref<8x128xf32, #tpu.memory_space<vmem>>, vector<8x128xf32>,
    return
  }
}

</mosaic_0001>

<llo_original>
// kernel: a2c_forward.1
$region0: #{a2c_forward.1}
  #allocation0 [shape = 'u32[]', space=smem, size = 0x4, offset = 0x4, fixed_abs, tag = 'smem constant byte address 0x4 - core index']
  #allocation1 [shape = 'u32[144,128]{1,0:T(1,128)}', space=vmem, size = 0x12000, scoped, tag = 'internal scratch']
  %s0 = inlined_call_operand.hbm [shape: f32[8,32], index: 0, kind: input, shape index: {}]
  %s1 = inlined_call_operand.hbm [shape: f32[32,256], index: 1, kind: input, shape index: {}]
  %s2 = inlined_call_operand.hbm [shape: f32[256,256], index: 2, kind: input, shape index: {}]
  %s3 = inlined_call_operand.hbm [shape: f32[256,256], index: 3, kind: input, shape index: {}]
  %s4 = inlined_call_operand.hbm [shape: f32[256,128], index: 4, kind: input, shape index: {}]
  %s5 = inlined_call_operand.hbm [shape: f32[9,256], index: 5, kind: input, shape index: {}]
  %s6 = inlined_call_operand.vmem [shape: f32[1,128], index: 6, kind: input, shape index: {}]
  %s7 = inlined_call_operand.vmem [shape: f32[8,128], index: 7, kind: output, shape index: {}]
  %s8 = sld [smem:[#allocation0]]
  $region62: #{a2c_forward.1} parent=0
    _
  %s10 = ssub.s32 1, %s8
  %s11 = scalar_select 0, %s10, %s8
  $region1: #{a2c_forward.1} parent=0
    #allocation2 [shape = 'u8[4096]{0}', space=vmem, size = 0x1000, scoped, tag = 'input window, operand 0, single buffered']
    #allocation3 [shape = 's32[1]{0}', space=sflag, size = 0x4, scoped, tag = 'scoped memory for a2c_forward.1']
    #allocation4 [shape = 'u8[32768]{0}', space=vmem, size = 0x8000, scoped, tag = 'input window, operand 1, single buffered']
    #allocation5 [shape = 's32[1]{0}', space=sflag, size = 0x4, scoped, tag = 'scoped memory for a2c_forward.1']
    #allocation6 [shape = 'u8[262144]{0}', space=vmem, size = 0x40000, scoped, tag = 'input window, operand 2, single buffered']
    #allocation7 [shape = 'u8[262144]{0}', space=vmem, size = 0x40000, scoped, tag = 'input window, operand 3, single buffered']
    #allocation8 [shape = 's32[1]{0}', space=sflag, size = 0x4, scoped, tag = 'scoped memory for a2c_forward.1']
    #allocation9 [shape = 'u8[131072]{0}', space=vmem, size = 0x20000, scoped, tag = 'input window, operand 4, single buffered']
    #allocation10 [shape = 'u8[16384]{0}', space=vmem, size = 0x4000, scoped, tag = 'input window, operand 5, single buffered']
    #allocation11 [shape = 's32[1]{0}', space=sflag, size = 0x4, scoped, tag = 'scoped memory for a2c_forward.1']
    %12 = vsyncpa [#allocation3], 0
    %13 = vsyncpa [#allocation5], 0
    %14 = vsyncpa [#allocation8], 0
    %15 = vsyncpa [#allocation11], 0
    // Predicated region
    $region2: #{a2c_forward.1} parent=1 // pred_check
      _
    $region3: #{a2c_forward.1} parent=1 // pred_check_branch
      %17 = sbr.rel (0) target = $region5
    $region4: #{a2c_forward.1} parent=1 // pred_region
      %s19 = ssub.s32 128, 128
      %20 = vsyncadd [#allocation3], %s19
      %s22 = sshll.u32 [#allocation2], 4
      %s23 = int_to_ptr.vmem [resolvable:$true] %s22
      %25 = dma.hbm_to_vmem [thread:$0]  %s0, 128, %s23, [#allocation3]
    $region5: #{a2c_forward.1} parent=1 // pred_fallthru
      _
    // Predicated region
    $region6: #{a2c_forward.1} parent=1 // pred_check
      _
    $region7: #{a2c_forward.1} parent=1 // pred_check_branch
      %27 = sbr.rel (0) target = $region9
    $region8: #{a2c_forward.1} parent=1 // pred_region
      %s29 = ssub.s32 1024, 1024
      %30 = vsyncadd [#allocation5], %s29
      %s31 = sshll.u32 [#allocation4], 4
      %s32 = int_to_ptr.vmem [resolvable:$true] %s31
      %37 = dma.hbm_to_vmem [thread:$0]  %s1, 1024, %s32, [#allocation5], 256, 256, 16
    $region9: #{a2c_forward.1} parent=1 // pred_fallthru
      _
    // Predicated region
    $region10: #{a2c_forward.1} parent=1 // pred_check
      _
    $region11: #{a2c_forward.1} parent=1 // pred_check_branch
      %39 = sbr.rel (0) target = $region13
    $region12: #{a2c_forward.1} parent=1 // pred_region
      %s41 = ssub.s32 8192, 8192
      %42 = vsyncadd [#allocation5], %s41
      %s43 = sshll.u32 [#allocation6], 4
      %s44 = int_to_ptr.vmem [resolvable:$true] %s43
      %49 = dma.hbm_to_vmem [thread:$0]  %s2, 8192, %s44, [#allocation5], 256, 256, 16
    $region13: #{a2c_forward.1} parent=1 // pred_fallthru
      _
    // Predicated region
    $region14: #{a2c_forward.1} parent=1 // pred_check
      _
    $region15: #{a2c_forward.1} parent=1 // pred_check_branch
      %51 = sbr.rel (0) target = $region17
    $region16: #{a2c_forward.1} parent=1 // pred_region
      %s53 = ssub.s32 8192, 8192
      %54 = vsyncadd [#allocation8], %s53
      %s55 = sshll.u32 [#allocation7], 4
      %s56 = int_to_ptr.vmem [resolvable:$true] %s55
      %61 = dma.hbm_to_vmem [thread:$0]  %s3, 8192, %s56, [#allocation8], 256, 256, 16
    $region17: #{a2c_forward.1} parent=1 // pred_fallthru
      _
    // Predicated region
    $region18: #{a2c_forward.1} parent=1 // pred_check
      _
    $region19: #{a2c_forward.1} parent=1 // pred_check_branch
      %63 = sbr.rel (0) target = $region21
    $region20: #{a2c_forward.1} parent=1 // pred_region
      %s65 = ssub.s32 4096, 4096
      %66 = vsyncadd [#allocation8], %s65
      %s67 = sshll.u32 [#allocation9], 4
      %s68 = int_to_ptr.vmem [resolvable:$true] %s67
      %73 = dma.hbm_to_vmem [thread:$0]  %s4, 4096, %s68, [#allocation8], 128, 128, 8
    $region21: #{a2c_forward.1} parent=1 // pred_fallthru
      _
    // Predicated region
    $region22: #{a2c_forward.1} parent=1 // pred_check
      _
    $region23: #{a2c_forward.1} parent=1 // pred_check_branch
      %75 = sbr.rel (0) target = $region25
    $region24: #{a2c_forward.1} parent=1 // pred_region
      %s77 = ssub.s32 512, 512
      %78 = vsyncadd [#allocation11], %s77
      %s79 = sshll.u32 [#allocation10], 4
      %s80 = int_to_ptr.vmem [resolvable:$true] %s79
      %85 = dma.hbm_to_vmem [thread:$0]  %s5, 512, %s80, [#allocation11], 256, 256, 16
    $region25: #{a2c_forward.1} parent=1 // pred_fallthru
      _
    // Predicated region
    $region26: #{a2c_forward.1} parent=1 // pred_check
      _
    $region27: #{a2c_forward.1} parent=1 // pred_check_branch
      %87 = sbr.rel (0) target = $region29
    $region28: #{a2c_forward.1} parent=1 // pred_region
      _
    $region29: #{a2c_forward.1} parent=1 // pred_fallthru
      _
    // Predicated region
    $region30: #{a2c_forward.1} parent=1 // pred_check
      _
    $region31: #{a2c_forward.1} parent=1 // pred_check_branch
      %89 = sbr.rel (0) target = $region33
    $region32: #{a2c_forward.1} parent=1 // pred_region
      %90 = dma.done [#allocation3], 128
    $region33: #{a2c_forward.1} parent=1 // pred_fallthru
      _
    // Predicated region
    $region34: #{a2c_forward.1} parent=1 // pred_check
      _
    $region35: #{a2c_forward.1} parent=1 // pred_check_branch
      %92 = sbr.rel (0) target = $region37
    $region36: #{a2c_forward.1} parent=1 // pred_region
      %93 = dma.done [#allocation5], 1024
    $region37: #{a2c_forward.1} parent=1 // pred_fallthru
      _
    // Predicated region
    $region38: #{a2c_forward.1} parent=1 // pred_check
      _
    $region39: #{a2c_forward.1} parent=1 // pred_check_branch
      %95 = sbr.rel (0) target = $region41
    $region40: #{a2c_forward.1} parent=1 // pred_region
      %96 = dma.done [#allocation5], 8192
    $region41: #{a2c_forward.1} parent=1 // pred_fallthru
      _
    // Predicated region
    $region42: #{a2c_forward.1} parent=1 // pred_check
      _
    $region43: #{a2c_forward.1} parent=1 // pred_check_branch
      %98 = sbr.rel (0) target = $region45
    $region44: #{a2c_forward.1} parent=1 // pred_region
      %99 = dma.done [#allocation8], 8192
    $region45: #{a2c_forward.1} parent=1 // pred_fallthru
      _
    // Predicated region
    $region46: #{a2c_forward.1} parent=1 // pred_check
      _
    $region47: #{a2c_forward.1} parent=1 // pred_check_branch
      %101 = sbr.rel (0) target = $region49
    $region48: #{a2c_forward.1} parent=1 // pred_region
      %102 = dma.done [#allocation8], 4096
    $region49: #{a2c_forward.1} parent=1 // pred_fallthru
      _
    // Predicated region
    $region50: #{a2c_forward.1} parent=1 // pred_check
      _
    $region51: #{a2c_forward.1} parent=1 // pred_check_branch
      %104 = sbr.rel (0) target = $region53
    $region52: #{a2c_forward.1} parent=1 // pred_region
      %105 = dma.done [#allocation11], 512
    $region53: #{a2c_forward.1} parent=1 // pred_fallthru
      _
    %v106 = vld [vmem:[#allocation10] sm:$0xff]
    %v107 = vld [vmem:[#allocation10 + $0x8] sm:$0xff]
    %v108 = vld [vmem:[#allocation10 + $0x10] sm:$0x1]
    %v109 = vld [vmem:[#allocation10 + $0x18] sm:$0x1]
    %v110 = vld [vmem:[#allocation2] sm:$0xff]
    %v111 = vld [vmem:[#allocation4] sm:$0xff]
    %v112 = vld [vmem:[#allocation4 + $0x8] sm:$0xff]
    %v113 = vld [vmem:[#allocation4 + $0x10] sm:$0xff]
    %v114 = vld [vmem:[#allocation4 + $0x18] sm:$0xff]
    %v115 = vld [vmem:[#allocation4 + $0x20] sm:$0xff]
    %v116 = vld [vmem:[#allocation4 + $0x28] sm:$0xff]
    %v117 = vld [vmem:[#allocation4 + $0x30] sm:$0xff]
    %v118 = vld [vmem:[#allocation4 + $0x38] sm:$0xff]
    %v119 = vlaneseq
    %v120 = vshrl.u32 %v119, 7
    %v121 = vsub.s32 0, %v120
    %v122 = vrot.slane %v106, %v121
    %v123 = vlaneseq
    %v124 = vshrl.u32 %v123, 7
    %v125 = vsub.s32 0, %v124
    %v126 = vrot.slane %v107, %v125
    %vm127 = vcmask 261120
    %v129 = vsel %vm127, %v110, 0
    %131 = vmatprep.subr.mxu0 %v112
    %132 = vmatpush1.msra.mxu0 %v111
    %133 = vmatprep.subr.mxu0 %v114
    %134 = vmatpush1.msra.mxu0 %v113
    %135 = vmatprep.subr.mxu0 %v116
    %136 = vmatpush1.msra.mxu0 %v115
    %137 = vmatprep.subr.mxu0 %v118
    %138 = vmatpush1.msra.mxu0 %v117
    %139 = vmatprep.subr.mxu0 0.0
    %140 = vmatpush1.msra.mxu0 0.0
    %141 = vmatprep.subr.mxu0 0.0
    %142 = vmatpush1.msra.mxu0 0.0
    %143 = vmatprep.subr.mxu0 0.0
    %144 = vmatpush1.msra.mxu0 0.0
    %145 = vmatprep.subr.mxu0 0.0
    %146 = vmatpush1.msra.mxu0 0.0
    %147 = vmatprep.subr.mxu0 0.0
    %148 = vmatpush1.msra.mxu0 0.0
    %149 = vmatprep.subr.mxu0 0.0
    %150 = vmatpush1.msra.mxu0 0.0
    %151 = vmatprep.subr.mxu0 0.0
    %152 = vmatpush1.msra.mxu0 0.0
    %153 = vmatprep.subr.mxu0 0.0
    %154 = vmatpush1.msra.mxu0 0.0
    %155 = vmatprep.subr.mxu0 0.0
    %156 = vmatpush1.msra.mxu0 0.0
    %157 = vmatprep.subr.mxu0 0.0
    %158 = vmatpush1.msra.mxu0 0.0
    %159 = vmatprep.subr.mxu0 0.0
    %160 = vmatpush1.msra.mxu0 0.0
    %161 = vmatprep.subr.mxu0 0.0
    %162 = vmatpush1.msra.mxu0 0.0
    %163 = vmatprep.subr.mxu0 0.0
    %164 = vmatpush1.msra.mxu0 0.0
    %165 = vmatprep.subr.mxu0 0.0
    %166 = vmatpush1.msra.mxu0 0.0
    %167 = vmatprep.subr.mxu0 0.0
    %168 = vmatpush1.msra.mxu0 0.0
    %169 = vmatprep.subr.mxu0 0.0
    %170 = vmatpush1.msra.mxu0 0.0
    %171 = vmatprep.subr.mxu0 0.0
    %172 = vmatpush1.msra.mxu0 0.0
    %173 = vmatprep.subr.mxu0 0.0
    %174 = vmatpush1.msra.mxu0 0.0
    %175 = vmatprep.subr.mxu0 0.0
    %176 = vmatpush1.msra.mxu0 0.0
    %177 = vmatprep.subr.mxu0 0.0
    %178 = vmatpush1.msra.mxu0 0.0
    %179 = vmatprep.subr.mxu0 0.0
    %180 = vmatpush1.msra.mxu0 0.0
    %181 = vmatprep.subr.mxu0 0.0
    %182 = vmatpush1.msra.mxu0 0.0
    %183 = vmatprep.subr.mxu0 0.0
    %184 = vmatpush1.msra.mxu0 0.0
    %185 = vmatprep.subr.mxu0 0.0
    %186 = vmatpush1.msra.mxu0 0.0
    %187 = vmatprep.subr.mxu0 0.0
    %188 = vmatpush1.msra.mxu0 0.0
    %189 = vmatprep.subr.mxu0 0.0
    %190 = vmatpush1.msra.mxu0 0.0
    %191 = vmatprep.subr.mxu0 0.0
    %192 = vmatpush1.msra.mxu0 0.0
    %193 = vmatprep.subr.mxu0 0.0
    %194 = vmatpush1.msra.mxu0 0.0
    %195 = vmatprep.mubr.f32.mxu0 0.0
    %196 = vmatmul.mubr.f32.gmra.mrb[0].mxu0 %v129
    %v197 = vpop.f32.mrb[0].mxu0
    %v198 = vadd.f32 %v122, %v197
    %v199 = vpop.f32.mrb[0].mxu0
    %v200 = vadd.f32 %v126, %v199
    %201 = vdwg.mxu0
    %v202 = vmax.f32 %v198, 0.0
    %v203 = vmax.f32 %v200, 0.0
    %v204 = vrot.slane %v202, 4
    %v205 = vadd.f32 %v202, %v204
    %v206 = vrot.slane %v205, 2
    %v207 = vadd.f32 %v205, %v206
    %v208 = vrot.slane %v207, 1
    %v209 = vadd.f32 %v207, %v208
    %v210 = vrot.slane %v203, 4
    %v211 = vadd.f32 %v203, %v210
    %v212 = vrot.slane %v211, 2
    %v213 = vadd.f32 %v211, %v212
    %v214 = vrot.slane %v213, 1
    %v215 = vadd.f32 %v213, %v214
    %v216 = vrcp.pop 8.0
    %v217 = vmul.f32 %v209, %v216
    %v218 = vmul.f32 %v215, %v216
    %v219 = vmul.f32 %v202, %v202
    %v220 = vmul.f32 %v203, %v203
    %v221 = vrot.slane %v219, 4
    %v222 = vadd.f32 %v219, %v221
    %v223 = vrot.slane %v222, 2
    %v224 = vadd.f32 %v222, %v223
    %v225 = vrot.slane %v224, 1
    %v226 = vadd.f32 %v224, %v225
    %v227 = vrot.slane %v220, 4
    %v228 = vadd.f32 %v220, %v227
    %v229 = vrot.slane %v228, 2
    %v230 = vadd.f32 %v228, %v229
    %v231 = vrot.slane %v230, 1
    %v232 = vadd.f32 %v230, %v231
    %v233 = vmul.f32 %v226, %v216
    %v234 = vmul.f32 %v232, %v216
    %v235 = vmul.f32 %v217, %v217
    %v236 = vmul.f32 %v218, %v218
    %v237 = vsub.f32 %v233, %v235
    %v238 = vsub.f32 %v234, %v236
    %v239 = vmax.f32 %v237, 0.0
    %v240 = vmax.f32 %v238, 0.0
    %v241 = vadd.f32 %v239, 1e-05
    %v242 = vadd.f32 %v240, 1e-05
    %v243 = vrsqrt.pop %v241
    %v244 = vrsqrt.pop %v242
    %v245 = vmul.f32 %v106, %v243
    %v246 = vmul.f32 %v107, %v244
    %v247 = vsub.f32 %v202, %v217
    %v248 = vsub.f32 %v203, %v218
    %v249 = vlaneseq
    %v250 = vshrl.u32 %v249, 7
    %v251 = vsub.s32 1, %v250
    %v252 = vrot.slane %v245, %v251
    %v253 = vlaneseq
    %v254 = vshrl.u32 %v253, 7
    %v255 = vsub.s32 1, %v254
    %v256 = vrot.slane %v246, %v255
    %v257 = vmul.f32 %v247, %v252
    %v258 = vmul.f32 %v248, %v256
    %v259 = vlaneseq
    %v260 = vshrl.u32 %v259, 7
    %v261 = vsub.s32 2, %v260
    %v262 = vrot.slane %v106, %v261
    %v263 = vlaneseq
    %v264 = vshrl.u32 %v263, 7
    %v265 = vsub.s32 2, %v264
    %v266 = vrot.slane %v107, %v265
    %v267 = vadd.f32 %v257, %v262
    %v268 = vadd.f32 %v258, %v266
    %v269 = vld [vmem:[#allocation6] sm:$0xff]
    %v270 = vld [vmem:[#allocation6 + $0x8] sm:$0xff]
    %v271 = vld [vmem:[#allocation6 + $0x10] sm:$0xff]
    %v272 = vld [vmem:[#allocation6 + $0x18] sm:$0xff]
    %v273 = vld [vmem:[#allocation6 + $0x20] sm:$0xff]
    %v274 = vld [vmem:[#allocation6 + $0x28] sm:$0xff]
    %v275 = vld [vmem:[#allocation6 + $0x30] sm:$0xff]
    %v276 = vld [vmem:[#allocation6 + $0x38] sm:$0xff]
    %v277 = vld [vmem:[#allocation6 + $0x40] sm:$0xff]
    %v278 = vld [vmem:[#allocation6 + $0x48] sm:$0xff]
    %v279 = vld [vmem:[#allocation6 + $0x50] sm:$0xff]
    %v280 = vld [vmem:[#allocation6 + $0x58] sm:$0xff]
    %v281 = vld [vmem:[#allocation6 + $0x60] sm:$0xff]
    %v282 = vld [vmem:[#allocation6 + $0x68] sm:$0xff]
    %v283 = vld [vmem:[#allocation6 + $0x70] sm:$0xff]
    %v284 = vld [vmem:[#allocation6 + $0x78] sm:$0xff]
    %v285 = vld [vmem:[#allocation6 + $0x80] sm:$0xff]
    %v286 = vld [vmem:[#allocation6 + $0x88] sm:$0xff]
    %v287 = vld [vmem:[#allocation6 + $0x90] sm:$0xff]
    %v288 = vld [vmem:[#allocation6 + $0x98] sm:$0xff]
    %v289 = vld [vmem:[#allocation6 + $0xa0] sm:$0xff]
    %v290 = vld [vmem:[#allocation6 + $0xa8] sm:$0xff]
    %v291 = vld [vmem:[#allocation6 + $0xb0] sm:$0xff]
    %v292 = vld [vmem:[#allocation6 + $0xb8] sm:$0xff]
    %v293 = vld [vmem:[#allocation6 + $0xc0] sm:$0xff]
    %v294 = vld [vmem:[#allocation6 + $0xc8] sm:$0xff]
    %v295 = vld [vmem:[#allocation6 + $0xd0] sm:$0xff]
    %v296 = vld [vmem:[#allocation6 + $0xd8] sm:$0xff]
    %v297 = vld [vmem:[#allocation6 + $0xe0] sm:$0xff]
    %v298 = vld [vmem:[#allocation6 + $0xe8] sm:$0xff]
    %v299 = vld [vmem:[#allocation6 + $0xf0] sm:$0xff]
    %v300 = vld [vmem:[#allocation6 + $0xf8] sm:$0xff]
    %v301 = vld [vmem:[#allocation6 + $0x100] sm:$0xff]
    %v302 = vld [vmem:[#allocation6 + $0x108] sm:$0xff]
    %v303 = vld [vmem:[#allocation6 + $0x110] sm:$0xff]
    %v304 = vld [vmem:[#allocation6 + $0x118] sm:$0xff]
    %v305 = vld [vmem:[#allocation6 + $0x120] sm:$0xff]
    %v306 = vld [vmem:[#allocation6 + $0x128] sm:$0xff]
    %v307 = vld [vmem:[#allocation6 + $0x130] sm:$0xff]
    %v308 = vld [vmem:[#allocation6 + $0x138] sm:$0xff]
    %v309 = vld [vmem:[#allocation6 + $0x140] sm:$0xff]
    %v310 = vld [vmem:[#allocation6 + $0x148] sm:$0xff]
    %v311 = vld [vmem:[#allocation6 + $0x150] sm:$0xff]
    %v312 = vld [vmem:[#allocation6 + $0x158] sm:$0xff]
    %v313 = vld [vmem:[#allocation6 + $0x160] sm:$0xff]
    %v314 = vld [vmem:[#allocation6 + $0x168] sm:$0xff]
    %v315 = vld [vmem:[#allocation6 + $0x170] sm:$0xff]
    %v316 = vld [vmem:[#allocation6 + $0x178] sm:$0xff]
    %v317 = vld [vmem:[#allocation6 + $0x180] sm:$0xff]
    %v318 = vld [vmem:[#allocation6 + $0x188] sm:$0xff]
    %v319 = vld [vmem:[#allocation6 + $0x190] sm:$0xff]
    %v320 = vld [vmem:[#allocation6 + $0x198] sm:$0xff]
    %v321 = vld [vmem:[#allocation6 + $0x1a0] sm:$0xff]
    %v322 = vld [vmem:[#allocation6 + $0x1a8] sm:$0xff]
    %v323 = vld [vmem:[#allocation6 + $0x1b0] sm:$0xff]
    %v324 = vld [vmem:[#allocation6 + $0x1b8] sm:$0xff]
    %v325 = vld [vmem:[#allocation6 + $0x1c0] sm:$0xff]
    %v326 = vld [vmem:[#allocation6 + $0x1c8] sm:$0xff]
    %v327 = vld [vmem:[#allocation6 + $0x1d0] sm:$0xff]
    %v328 = vld [vmem:[#allocation6 + $0x1d8] sm:$0xff]
    %v329 = vld [vmem:[#allocation6 + $0x1e0] sm:$0xff]
    %v330 = vld [vmem:[#allocation6 + $0x1e8] sm:$0xff]
    %v331 = vld [vmem:[#allocation6 + $0x1f0] sm:$0xff]
    %v332 = vld [vmem:[#allocation6 + $0x1f8] sm:$0xff]
    %v333 = vlaneseq
    %v334 = vshrl.u32 %v333, 7
    %v335 = vsub.s32 3, %v334
    %v336 = vrot.slane %v106, %v335
    %v337 = vlaneseq
    %v338 = vshrl.u32 %v337, 7
    %v339 = vsub.s32 3, %v338
    %v340 = vrot.slane %v107, %v339
    %341 = vmatprep.subr.mxu0 %v270
    %342 = vmatpush1.msra.mxu0 %v269
    %343 = vmatprep.subr.mxu0 %v272
    %344 = vmatpush1.msra.mxu0 %v271
    %345 = vmatprep.subr.mxu0 %v274
    %346 = vmatpush1.msra.mxu0 %v273
    %347 = vmatprep.subr.mxu0 %v276
    %348 = vmatpush1.msra.mxu0 %v275
    %349 = vmatprep.subr.mxu0 %v278
    %350 = vmatpush1.msra.mxu0 %v277
    %351 = vmatprep.subr.mxu0 %v280
    %352 = vmatpush1.msra.mxu0 %v279
    %353 = vmatprep.subr.mxu0 %v282
    %354 = vmatpush1.msra.mxu0 %v281
    %355 = vmatprep.subr.mxu0 %v284
    %356 = vmatpush1.msra.mxu0 %v283
    %357 = vmatprep.subr.mxu0 %v286
    %358 = vmatpush1.msra.mxu0 %v285
    %359 = vmatprep.subr.mxu0 %v288
    %360 = vmatpush1.msra.mxu0 %v287
    %361 = vmatprep.subr.mxu0 %v290
    %362 = vmatpush1.msra.mxu0 %v289
    %363 = vmatprep.subr.mxu0 %v292
    %364 = vmatpush1.msra.mxu0 %v291
    %365 = vmatprep.subr.mxu0 %v294
    %366 = vmatpush1.msra.mxu0 %v293
    %367 = vmatprep.subr.mxu0 %v296
    %368 = vmatpush1.msra.mxu0 %v295
    %369 = vmatprep.subr.mxu0 %v298
    %370 = vmatpush1.msra.mxu0 %v297
    %371 = vmatprep.subr.mxu0 %v300
    %372 = vmatpush1.msra.mxu0 %v299
    %373 = vmatprep.subr.mxu0 %v302
    %374 = vmatpush1.msra.mxu0 %v301
    %375 = vmatprep.subr.mxu0 %v304
    %376 = vmatpush1.msra.mxu0 %v303
    %377 = vmatprep.subr.mxu0 %v306
    %378 = vmatpush1.msra.mxu0 %v305
    %379 = vmatprep.subr.mxu0 %v308
    %380 = vmatpush1.msra.mxu0 %v307
    %381 = vmatprep.subr.mxu0 %v310
    %382 = vmatpush1.msra.mxu0 %v309
    %383 = vmatprep.subr.mxu0 %v312
    %384 = vmatpush1.msra.mxu0 %v311
    %385 = vmatprep.subr.mxu0 %v314
    %386 = vmatpush1.msra.mxu0 %v313
    %387 = vmatprep.subr.mxu0 %v316
    %388 = vmatpush1.msra.mxu0 %v315
    %389 = vmatprep.subr.mxu0 %v318
    %390 = vmatpush1.msra.mxu0 %v317
    %391 = vmatprep.subr.mxu0 %v320
    %392 = vmatpush1.msra.mxu0 %v319
    %393 = vmatprep.subr.mxu0 %v322
    %394 = vmatpush1.msra.mxu0 %v321
    %395 = vmatprep.subr.mxu0 %v324
    %396 = vmatpush1.msra.mxu0 %v323
    %397 = vmatprep.subr.mxu0 %v326
    %398 = vmatpush1.msra.mxu0 %v325
    %399 = vmatprep.subr.mxu0 %v328
    %400 = vmatpush1.msra.mxu0 %v327
    %401 = vmatprep.subr.mxu0 %v330
    %402 = vmatpush1.msra.mxu0 %v329
    %403 = vmatprep.subr.mxu0 %v332
    %404 = vmatpush1.msra.mxu0 %v331
    %405 = vmatprep.mubr.f32.mxu0 %v268
    %406 = vmatmul.mubr.f32.gmra.mrb[0].mxu0 %v267
    %v407 = vpop.f32.mrb[0].mxu0
    %v408 = vadd.f32 %v336, %v407
    %v409 = vpop.f32.mrb[0].mxu0
    %v410 = vadd.f32 %v340, %v409
    %411 = vdwg.mxu0
    %v412 = vmax.f32 %v408, 0.0
    %v413 = vmax.f32 %v410, 0.0
    %v414 = vrot.slane %v412, 4
    %v415 = vadd.f32 %v412, %v414
    %v416 = vrot.slane %v415, 2
    %v417 = vadd.f32 %v415, %v416
    %v418 = vrot.slane %v417, 1
    %v419 = vadd.f32 %v417, %v418
    %v420 = vrot.slane %v413, 4
    %v421 = vadd.f32 %v413, %v420
    %v422 = vrot.slane %v421, 2
    %v423 = vadd.f32 %v421, %v422
    %v424 = vrot.slane %v423, 1
    %v425 = vadd.f32 %v423, %v424
    %v426 = vmul.f32 %v419, %v216
    %v427 = vmul.f32 %v425, %v216
    %v428 = vmul.f32 %v412, %v412
    %v429 = vmul.f32 %v413, %v413
    %v430 = vrot.slane %v428, 4
    %v431 = vadd.f32 %v428, %v430
    %v432 = vrot.slane %v431, 2
    %v433 = vadd.f32 %v431, %v432
    %v434 = vrot.slane %v433, 1
    %v435 = vadd.f32 %v433, %v434
    %v436 = vrot.slane %v429, 4
    %v437 = vadd.f32 %v429, %v436
    %v438 = vrot.slane %v437, 2
    %v439 = vadd.f32 %v437, %v438
    %v440 = vrot.slane %v439, 1
    %v441 = vadd.f32 %v439, %v440
    %v442 = vmul.f32 %v435, %v216
    %v443 = vmul.f32 %v441, %v216
    %v444 = vmul.f32 %v426, %v426
    %v445 = vmul.f32 %v427, %v427
    %v446 = vsub.f32 %v442, %v444
    %v447 = vsub.f32 %v443, %v445
    %v448 = vmax.f32 %v446, 0.0
    %v449 = vmax.f32 %v447, 0.0
    %v450 = vadd.f32 %v448, 1e-05
    %v451 = vadd.f32 %v449, 1e-05
    %v452 = vrsqrt.pop %v450
    %v453 = vrsqrt.pop %v451
    %v454 = vmul.f32 %v106, %v452
    %v455 = vmul.f32 %v107, %v453
    %v456 = vsub.f32 %v412, %v426
    %v457 = vsub.f32 %v413, %v427
    %v458 = vlaneseq
    %v459 = vshrl.u32 %v458, 7
    %v460 = vsub.s32 4, %v459
    %v461 = vrot.slane %v454, %v460
    %v462 = vlaneseq
    %v463 = vshrl.u32 %v462, 7
    %v464 = vsub.s32 4, %v463
    %v465 = vrot.slane %v455, %v464
    %v466 = vmul.f32 %v456, %v461
    %v467 = vmul.f32 %v457, %v465
    %v468 = vlaneseq
    %v469 = vshrl.u32 %v468, 7
    %v470 = vsub.s32 5, %v469
    %v471 = vrot.slane %v106, %v470
    %v472 = vlaneseq
    %v473 = vshrl.u32 %v472, 7
    %v474 = vsub.s32 5, %v473
    %v475 = vrot.slane %v107, %v474
    %v476 = vadd.f32 %v466, %v471
    %v477 = vadd.f32 %v467, %v475
    %v478 = vld [vmem:[#allocation7] sm:$0xff]
    %v479 = vld [vmem:[#allocation7 + $0x8] sm:$0xff]
    %v480 = vld [vmem:[#allocation7 + $0x10] sm:$0xff]
    %v481 = vld [vmem:[#allocation7 + $0x18] sm:$0xff]
    %v482 = vld [vmem:[#allocation7 + $0x20] sm:$0xff]
    %v483 = vld [vmem:[#allocation7 + $0x28] sm:$0xff]
    %v484 = vld [vmem:[#allocation7 + $0x30] sm:$0xff]
    %v485 = vld [vmem:[#allocation7 + $0x38] sm:$0xff]
    %v486 = vld [vmem:[#allocation7 + $0x40] sm:$0xff]
    %v487 = vld [vmem:[#allocation7 + $0x48] sm:$0xff]
    %v488 = vld [vmem:[#allocation7 + $0x50] sm:$0xff]
    %v489 = vld [vmem:[#allocation7 + $0x58] sm:$0xff]
    %v490 = vld [vmem:[#allocation7 + $0x60] sm:$0xff]
    %v491 = vld [vmem:[#allocation7 + $0x68] sm:$0xff]
    %v492 = vld [vmem:[#allocation7 + $0x70] sm:$0xff]
    %v493 = vld [vmem:[#allocation7 + $0x78] sm:$0xff]
    %v494 = vld [vmem:[#allocation7 + $0x80] sm:$0xff]
    %v495 = vld [vmem:[#allocation7 + $0x88] sm:$0xff]
    %v496 = vld [vmem:[#allocation7 + $0x90] sm:$0xff]
    %v497 = vld [vmem:[#allocation7 + $0x98] sm:$0xff]
    %v498 = vld [vmem:[#allocation7 + $0xa0] sm:$0xff]
    %v499 = vld [vmem:[#allocation7 + $0xa8] sm:$0xff]
    %v500 = vld [vmem:[#allocation7 + $0xb0] sm:$0xff]
    %v501 = vld [vmem:[#allocation7 + $0xb8] sm:$0xff]
    %v502 = vld [vmem:[#allocation7 + $0xc0] sm:$0xff]
    %v503 = vld [vmem:[#allocation7 + $0xc8] sm:$0xff]
    %v504 = vld [vmem:[#allocation7 + $0xd0] sm:$0xff]
    %v505 = vld [vmem:[#allocation7 + $0xd8] sm:$0xff]
    %v506 = vld [vmem:[#allocation7 + $0xe0] sm:$0xff]
    %v507 = vld [vmem:[#allocation7 + $0xe8] sm:$0xff]
    %v508 = vld [vmem:[#allocation7 + $0xf0] sm:$0xff]
    %v509 = vld [vmem:[#allocation7 + $0xf8] sm:$0xff]
    %v510 = vld [vmem:[#allocation7 + $0x100] sm:$0xff]
    %v511 = vld [vmem:[#allocation7 + $0x108] sm:$0xff]
    %v512 = vld [vmem:[#allocation7 + $0x110] sm:$0xff]
    %v513 = vld [vmem:[#allocation7 + $0x118] sm:$0xff]
    %v514 = vld [vmem:[#allocation7 + $0x120] sm:$0xff]
    %v515 = vld [vmem:[#allocation7 + $0x128] sm:$0xff]
    %v516 = vld [vmem:[#allocation7 + $0x130] sm:$0xff]
    %v517 = vld [vmem:[#allocation7 + $0x138] sm:$0xff]
    %v518 = vld [vmem:[#allocation7 + $0x140] sm:$0xff]
    %v519 = vld [vmem:[#allocation7 + $0x148] sm:$0xff]
    %v520 = vld [vmem:[#allocation7 + $0x150] sm:$0xff]
    %v521 = vld [vmem:[#allocation7 + $0x158] sm:$0xff]
    %v522 = vld [vmem:[#allocation7 + $0x160] sm:$0xff]
    %v523 = vld [vmem:[#allocation7 + $0x168] sm:$0xff]
    %v524 = vld [vmem:[#allocation7 + $0x170] sm:$0xff]
    %v525 = vld [vmem:[#allocation7 + $0x178] sm:$0xff]
    %v526 = vld [vmem:[#allocation7 + $0x180] sm:$0xff]
    %v527 = vld [vmem:[#allocation7 + $0x188] sm:$0xff]
    %v528 = vld [vmem:[#allocation7 + $0x190] sm:$0xff]
    %v529 = vld [vmem:[#allocation7 + $0x198] sm:$0xff]
    %v530 = vld [vmem:[#allocation7 + $0x1a0] sm:$0xff]
    %v531 = vld [vmem:[#allocation7 + $0x1a8] sm:$0xff]
    %v532 = vld [vmem:[#allocation7 + $0x1b0] sm:$0xff]
    %v533 = vld [vmem:[#allocation7 + $0x1b8] sm:$0xff]
    %v534 = vld [vmem:[#allocation7 + $0x1c0] sm:$0xff]
    %v535 = vld [vmem:[#allocation7 + $0x1c8] sm:$0xff]
    %v536 = vld [vmem:[#allocation7 + $0x1d0] sm:$0xff]
    %v537 = vld [vmem:[#allocation7 + $0x1d8] sm:$0xff]
    %v538 = vld [vmem:[#allocation7 + $0x1e0] sm:$0xff]
    %v539 = vld [vmem:[#allocation7 + $0x1e8] sm:$0xff]
    %v540 = vld [vmem:[#allocation7 + $0x1f0] sm:$0xff]
    %v541 = vld [vmem:[#allocation7 + $0x1f8] sm:$0xff]
    %v542 = vlaneseq
    %v543 = vshrl.u32 %v542, 7
    %v544 = vsub.s32 6, %v543
    %v545 = vrot.slane %v106, %v544
    %v546 = vlaneseq
    %v547 = vshrl.u32 %v546, 7
    %v548 = vsub.s32 6, %v547
    %v549 = vrot.slane %v107, %v548
    %550 = vmatprep.subr.mxu0 %v479
    %551 = vmatpush1.msra.mxu0 %v478
    %552 = vmatprep.subr.mxu0 %v481
    %553 = vmatpush1.msra.mxu0 %v480
    %554 = vmatprep.subr.mxu0 %v483
    %555 = vmatpush1.msra.mxu0 %v482
    %556 = vmatprep.subr.mxu0 %v485
    %557 = vmatpush1.msra.mxu0 %v484
    %558 = vmatprep.subr.mxu0 %v487
    %559 = vmatpush1.msra.mxu0 %v486
    %560 = vmatprep.subr.mxu0 %v489
    %561 = vmatpush1.msra.mxu0 %v488
    %562 = vmatprep.subr.mxu0 %v491
    %563 = vmatpush1.msra.mxu0 %v490
    %564 = vmatprep.subr.mxu0 %v493
    %565 = vmatpush1.msra.mxu0 %v492
    %566 = vmatprep.subr.mxu0 %v495
    %567 = vmatpush1.msra.mxu0 %v494
    %568 = vmatprep.subr.mxu0 %v497
    %569 = vmatpush1.msra.mxu0 %v496
    %570 = vmatprep.subr.mxu0 %v499
    %571 = vmatpush1.msra.mxu0 %v498
    %572 = vmatprep.subr.mxu0 %v501
    %573 = vmatpush1.msra.mxu0 %v500
    %574 = vmatprep.subr.mxu0 %v503
    %575 = vmatpush1.msra.mxu0 %v502
    %576 = vmatprep.subr.mxu0 %v505
    %577 = vmatpush1.msra.mxu0 %v504
    %578 = vmatprep.subr.mxu0 %v507
    %579 = vmatpush1.msra.mxu0 %v506
    %580 = vmatprep.subr.mxu0 %v509
    %581 = vmatpush1.msra.mxu0 %v508
    %582 = vmatprep.subr.mxu0 %v511
    %583 = vmatpush1.msra.mxu0 %v510
    %584 = vmatprep.subr.mxu0 %v513
    %585 = vmatpush1.msra.mxu0 %v512
    %586 = vmatprep.subr.mxu0 %v515
    %587 = vmatpush1.msra.mxu0 %v514
    %588 = vmatprep.subr.mxu0 %v517
    %589 = vmatpush1.msra.mxu0 %v516
    %590 = vmatprep.subr.mxu0 %v519
    %591 = vmatpush1.msra.mxu0 %v518
    %592 = vmatprep.subr.mxu0 %v521
    %593 = vmatpush1.msra.mxu0 %v520
    %594 = vmatprep.subr.mxu0 %v523
    %595 = vmatpush1.msra.mxu0 %v522
    %596 = vmatprep.subr.mxu0 %v525
    %597 = vmatpush1.msra.mxu0 %v524
    %598 = vmatprep.subr.mxu0 %v527
    %599 = vmatpush1.msra.mxu0 %v526
    %600 = vmatprep.subr.mxu0 %v529
    %601 = vmatpush1.msra.mxu0 %v528
    %602 = vmatprep.subr.mxu0 %v531
    %603 = vmatpush1.msra.mxu0 %v530
    %604 = vmatprep.subr.mxu0 %v533
    %605 = vmatpush1.msra.mxu0 %v532
    %606 = vmatprep.subr.mxu0 %v535
    %607 = vmatpush1.msra.mxu0 %v534
    %608 = vmatprep.subr.mxu0 %v537
    %609 = vmatpush1.msra.mxu0 %v536
    %610 = vmatprep.subr.mxu0 %v539
    %611 = vmatpush1.msra.mxu0 %v538
    %612 = vmatprep.subr.mxu0 %v541
    %613 = vmatpush1.msra.mxu0 %v540
    %614 = vmatprep.mubr.f32.mxu0 %v477
    %615 = vmatmul.mubr.f32.gmra.mrb[0].mxu0 %v476
    %v616 = vpop.f32.mrb[0].mxu0
    %v617 = vadd.f32 %v545, %v616
    %v618 = vpop.f32.mrb[0].mxu0
    %v619 = vadd.f32 %v549, %v618
    %620 = vdwg.mxu0
    %v621 = vmax.f32 %v617, 0.0
    %v622 = vmax.f32 %v619, 0.0
    %v623 = vrot.slane %v621, 4
    %v624 = vadd.f32 %v621, %v623
    %v625 = vrot.slane %v624, 2
    %v626 = vadd.f32 %v624, %v625
    %v627 = vrot.slane %v626, 1
    %v628 = vadd.f32 %v626, %v627
    %v629 = vrot.slane %v622, 4
    %v630 = vadd.f32 %v622, %v629
    %v631 = vrot.slane %v630, 2
    %v632 = vadd.f32 %v630, %v631
    %v633 = vrot.slane %v632, 1
    %v634 = vadd.f32 %v632, %v633
    %v635 = vmul.f32 %v628, %v216
    %v636 = vmul.f32 %v634, %v216
    %v637 = vmul.f32 %v621, %v621
    %v638 = vmul.f32 %v622, %v622
    %v639 = vrot.slane %v637, 4
    %v640 = vadd.f32 %v637, %v639
    %v641 = vrot.slane %v640, 2
    %v642 = vadd.f32 %v640, %v641
    %v643 = vrot.slane %v642, 1
    %v644 = vadd.f32 %v642, %v643
    %v645 = vrot.slane %v638, 4
    %v646 = vadd.f32 %v638, %v645
    %v647 = vrot.slane %v646, 2
    %v648 = vadd.f32 %v646, %v647
    %v649 = vrot.slane %v648, 1
    %v650 = vadd.f32 %v648, %v649
    %v651 = vmul.f32 %v644, %v216
    %v652 = vmul.f32 %v650, %v216
    %v653 = vmul.f32 %v635, %v635
    %v654 = vmul.f32 %v636, %v636
    %v655 = vsub.f32 %v651, %v653
    %v656 = vsub.f32 %v652, %v654
    %v657 = vmax.f32 %v655, 0.0
    %v658 = vmax.f32 %v656, 0.0
    %v659 = vadd.f32 %v657, 1e-05
    %v660 = vadd.f32 %v658, 1e-05
    %v661 = vrsqrt.pop %v659
    %v662 = vrsqrt.pop %v660
    %v663 = vmul.f32 %v106, %v661
    %v664 = vmul.f32 %v107, %v662
    %v665 = vsub.f32 %v621, %v635
    %v666 = vsub.f32 %v622, %v636
    %v667 = vlaneseq
    %v668 = vshrl.u32 %v667, 7
    %v669 = vsub.s32 7, %v668
    %v670 = vrot.slane %v663, %v669
    %v671 = vlaneseq
    %v672 = vshrl.u32 %v671, 7
    %v673 = vsub.s32 7, %v672
    %v674 = vrot.slane %v664, %v673
    %v675 = vmul.f32 %v665, %v670
    %v676 = vmul.f32 %v666, %v674
    %v677 = vlaneseq
    %v678 = vshrl.u32 %v677, 7
    %v679 = vsub.s32 0, %v678
    %v680 = vrot.slane %v108, %v679
    %v681 = vlaneseq
    %v682 = vshrl.u32 %v681, 7
    %v683 = vsub.s32 0, %v682
    %v684 = vrot.slane %v109, %v683
    %v685 = vadd.f32 %v675, %v680
    %v686 = vadd.f32 %v676, %v684
    %v687 = vld [vmem:[#allocation9] sm:$0xff]
    %v688 = vld [vmem:[#allocation9 + $0x8] sm:$0xff]
    %v689 = vld [vmem:[#allocation9 + $0x10] sm:$0xff]
    %v690 = vld [vmem:[#allocation9 + $0x18] sm:$0xff]
    %v691 = vld [vmem:[#allocation9 + $0x20] sm:$0xff]
    %v692 = vld [vmem:[#allocation9 + $0x28] sm:$0xff]
    %v693 = vld [vmem:[#allocation9 + $0x30] sm:$0xff]
    %v694 = vld [vmem:[#allocation9 + $0x38] sm:$0xff]
    %v695 = vld [vmem:[#allocation9 + $0x40] sm:$0xff]
    %v696 = vld [vmem:[#allocation9 + $0x48] sm:$0xff]
    %v697 = vld [vmem:[#allocation9 + $0x50] sm:$0xff]
    %v698 = vld [vmem:[#allocation9 + $0x58] sm:$0xff]
    %v699 = vld [vmem:[#allocation9 + $0x60] sm:$0xff]
    %v700 = vld [vmem:[#allocation9 + $0x68] sm:$0xff]
    %v701 = vld [vmem:[#allocation9 + $0x70] sm:$0xff]
    %v702 = vld [vmem:[#allocation9 + $0x78] sm:$0xff]
    %v703 = vld [vmem:[#allocation9 + $0x80] sm:$0xff]
    %v704 = vld [vmem:[#allocation9 + $0x88] sm:$0xff]
    %v705 = vld [vmem:[#allocation9 + $0x90] sm:$0xff]
    %v706 = vld [vmem:[#allocation9 + $0x98] sm:$0xff]
    %v707 = vld [vmem:[#allocation9 + $0xa0] sm:$0xff]
    %v708 = vld [vmem:[#allocation9 + $0xa8] sm:$0xff]
    %v709 = vld [vmem:[#allocation9 + $0xb0] sm:$0xff]
    %v710 = vld [vmem:[#allocation9 + $0xb8] sm:$0xff]
    %v711 = vld [vmem:[#allocation9 + $0xc0] sm:$0xff]
    %v712 = vld [vmem:[#allocation9 + $0xc8] sm:$0xff]
    %v713 = vld [vmem:[#allocation9 + $0xd0] sm:$0xff]
    %v714 = vld [vmem:[#allocation9 + $0xd8] sm:$0xff]
    %v715 = vld [vmem:[#allocation9 + $0xe0] sm:$0xff]
    %v716 = vld [vmem:[#allocation9 + $0xe8] sm:$0xff]
    %v717 = vld [vmem:[#allocation9 + $0xf0] sm:$0xff]
    %v718 = vld [vmem:[#allocation9 + $0xf8] sm:$0xff]
    %v719 = vld [vmem:[%s6] sm:$0x1]
    %v721 = vlaneseq
    %v722 = vshrl.u32 %v721, 7
    %v723 = vsub.s32 0, %v722
    %v724 = vrot.slane %v719, %v723
    %726 = vmatprep.subr.mxu0 0.0
    %727 = vmatpush1.msra.mxu0 %v687
    %728 = vmatprep.subr.mxu0 0.0
    %729 = vmatpush1.msra.mxu0 %v688
    %730 = vmatprep.subr.mxu0 0.0
    %731 = vmatpush1.msra.mxu0 %v689
    %732 = vmatprep.subr.mxu0 0.0
    %733 = vmatpush1.msra.mxu0 %v690
    %734 = vmatprep.subr.mxu0 0.0
    %735 = vmatpush1.msra.mxu0 %v691
    %736 = vmatprep.subr.mxu0 0.0
    %737 = vmatpush1.msra.mxu0 %v692
    %738 = vmatprep.subr.mxu0 0.0
    %739 = vmatpush1.msra.mxu0 %v693
    %740 = vmatprep.subr.mxu0 0.0
    %741 = vmatpush1.msra.mxu0 %v694
    %742 = vmatprep.subr.mxu0 0.0
    %743 = vmatpush1.msra.mxu0 %v695
    %744 = vmatprep.subr.mxu0 0.0
    %745 = vmatpush1.msra.mxu0 %v696
    %746 = vmatprep.subr.mxu0 0.0
    %747 = vmatpush1.msra.mxu0 %v697
    %748 = vmatprep.subr.mxu0 0.0
    %749 = vmatpush1.msra.mxu0 %v698
    %750 = vmatprep.subr.mxu0 0.0
    %751 = vmatpush1.msra.mxu0 %v699
    %752 = vmatprep.subr.mxu0 0.0
    %753 = vmatpush1.msra.mxu0 %v700
    %754 = vmatprep.subr.mxu0 0.0
    %755 = vmatpush1.msra.mxu0 %v701
    %756 = vmatprep.subr.mxu0 0.0
    %757 = vmatpush1.msra.mxu0 %v702
    %758 = vmatprep.subr.mxu0 0.0
    %759 = vmatpush1.msra.mxu0 %v703
    %760 = vmatprep.subr.mxu0 0.0
    %761 = vmatpush1.msra.mxu0 %v704
    %762 = vmatprep.subr.mxu0 0.0
    %763 = vmatpush1.msra.mxu0 %v705
    %764 = vmatprep.subr.mxu0 0.0
    %765 = vmatpush1.msra.mxu0 %v706
    %766 = vmatprep.subr.mxu0 0.0
    %767 = vmatpush1.msra.mxu0 %v707
    %768 = vmatprep.subr.mxu0 0.0
    %769 = vmatpush1.msra.mxu0 %v708
    %770 = vmatprep.subr.mxu0 0.0
    %771 = vmatpush1.msra.mxu0 %v709
    %772 = vmatprep.subr.mxu0 0.0
    %773 = vmatpush1.msra.mxu0 %v710
    %774 = vmatprep.subr.mxu0 0.0
    %775 = vmatpush1.msra.mxu0 %v711
    %776 = vmatprep.subr.mxu0 0.0
    %777 = vmatpush1.msra.mxu0 %v712
    %778 = vmatprep.subr.mxu0 0.0
    %779 = vmatpush1.msra.mxu0 %v713
    %780 = vmatprep.subr.mxu0 0.0
    %781 = vmatpush1.msra.mxu0 %v714
    %782 = vmatprep.subr.mxu0 0.0
    %783 = vmatpush1.msra.mxu0 %v715
    %784 = vmatprep.subr.mxu0 0.0
    %785 = vmatpush1.msra.mxu0 %v716
    %786 = vmatprep.subr.mxu0 0.0
    %787 = vmatpush1.msra.mxu0 %v717
    %788 = vmatprep.subr.mxu0 0.0
    %789 = vmatpush1.msra.mxu0 %v718
    %790 = vmatprep.mubr.f32.mxu0 %v686
    %791 = vmatmul.mubr.f32.gmra.mrb[0].mxu0 %v685
    %v792 = vpop.f32.mrb[0].mxu0
    %v793 = vadd.f32 %v724, %v792
    %v794 = vpop.f32.mrb[0].mxu0
    %795 = vdwg.mxu0
    %796 = vst [vmem:[%s7] sm:$0xff] %v793
    // Predicated region
    $region54: #{a2c_forward.1} parent=1 // pred_check
      _
    $region55: #{a2c_forward.1} parent=1 // pred_check_branch
      %798 = sbr.rel (0) target = $region57
    $region56: #{a2c_forward.1} parent=1 // pred_region
      _
    $region57: #{a2c_forward.1} parent=1 // pred_fallthru
      _
    // Predicated region
    $region58: #{a2c_forward.1} parent=1 // pred_check
      _
    $region59: #{a2c_forward.1} parent=1 // pred_check_branch
      %800 = sbr.rel (0) target = $region61
    $region60: #{a2c_forward.1} parent=1 // pred_region
      _
    $region61: #{a2c_forward.1} parent=1 // pred_fallthru
      _
    %801 = vsyncpa [#allocation3], 1
    %802 = vsyncpa [#allocation5], 1
    %803 = vsyncpa [#allocation8], 1
    %804 = vsyncpa [#allocation11], 1

</llo_original>
